<compile_context>
chip_gen: v6e
topology: v6e:2x2x1
jax: 0.10.0
libtpu: 0.0.40
codegen_flags: <defaults>
</compile_context>

<pallas_src>
import functools

import jax
import jax.numpy as jnp
from jax.experimental import pallas as pl
from jax.experimental.pallas import tpu as pltpu


_LANES = 128          # lane width of a vreg
_MAX_BLOCK_ROWS = 256 # sublane rows per grid step (256*128 batch elems)


def _linear1_kernel(w_ref, b_ref, x_ref, y_ref):
    # w_ref: (3,) f32 SMEM; b_ref: (1,) f32 SMEM.
    # x_ref: (3, R, 128) f32 VMEM tile — one (R, 128) plane per input feature.
    # y_ref: (R, 128) f32 VMEM tile — fully dense vregs, unmasked stores.
    x = x_ref[...]
    y_ref[...] = (x[0] * w_ref[0]
                  + x[1] * w_ref[1]
                  + x[2] * w_ref[2]
                  + b_ref[0])


@functools.partial(jax.jit, static_argnames=("block_rows",))
def _linear1_pallas(x1, w1, b1, *, block_rows=None):
    """y = x1 @ w1.T + b1, returned as shape (B,). x1: (B, 3) f32."""
    B, F = x1.shape
    assert F == 3, F

    rows_min = pl.cdiv(B, _LANES)                       # rows needed to hold B
    if block_rows is None:
        block_rows = min(_MAX_BLOCK_ROWS, ((rows_min + 7) // 8) * 8)
    assert block_rows % 8 == 0, block_rows
    n_blocks = pl.cdiv(rows_min, block_rows)
    rows_total = n_blocks * block_rows
    b_pad = rows_total * _LANES

    # Lane/sublane-dense layout: batch flattened onto (rows, 128), one plane
    # per feature. Padding lanes are zero and sliced off after the call.
    x_t = jnp.pad(x1.T.astype(jnp.float32), ((0, 0), (0, b_pad - B)))
    x_planes = x_t.reshape(3, rows_total, _LANES)       # (3, rows, 128)
    w_flat = w1.reshape(3).astype(jnp.float32)          # 3 scalars -> SMEM
    b_flat = b1.reshape(1).astype(jnp.float32)          # 1 scalar  -> SMEM

    smem_spec = pl.BlockSpec(memory_space=pltpu.MemorySpace.SMEM)
    y = pl.pallas_call(
        _linear1_kernel,
        grid=(n_blocks,),
        in_specs=[
            smem_spec,                                                   # w
            smem_spec,                                                   # b
            pl.BlockSpec((3, block_rows, _LANES), lambda i: (0, i, 0)),  # x
        ],
        out_specs=pl.BlockSpec((block_rows, _LANES), lambda i: (i, 0)),
        out_shape=jax.ShapeDtypeStruct((rows_total, _LANES), jnp.float32),
        compiler_params=pltpu.CompilerParams(
            dimension_semantics=("parallel",)),
    )(w_flat, b_flat, x_planes)
    return y.reshape(b_pad)[:B]                                          # (B,)


def model_with_multiple_inputs(x1, x2, w1, b1, w2, b2, *, block_rows=None):
    """Forward of ModelWithMultipleInputs: returns linear1(x1).squeeze().

    linear2(x2) is evaluated and discarded by the PyTorch forward; the math
    is side-effect free, so the dead branch is dropped here (keeping it
    would force un-DCE-able DMA + compute through the Pallas call).
    """
    del x2, w2, b2
    return _linear1_pallas(x1, w1, b1, block_rows=block_rows)


def init_params(key):
    """Deterministic parameter init matching nn.Linear shapes."""
    k1, k2, k3, k4 = jax.random.split(key, 4)
    lim1 = 1.0 / jnp.sqrt(3.0)
    lim2 = 1.0 / jnp.sqrt(4.0)
    w1 = jax.random.uniform(k1, (1, 3), jnp.float32, -lim1, lim1)  # (out, in)
    b1 = jax.random.uniform(k2, (1, 1), jnp.float32, -lim1, lim1)
    w2 = jax.random.uniform(k3, (1, 4), jnp.float32, -lim2, lim2)
    b2 = jax.random.uniform(k4, (1, 1), jnp.float32, -lim2, lim2)
    return w1, b1, w2, b2


if __name__ == "__main__":
    key = jax.random.PRNGKey(0)
    kp, kd = jax.random.split(key)
    w1, b1, w2, b2 = init_params(kp)

    # (B, block_rows): small single-block case, plus a multi-block case with
    # a forced small block to exercise the grid + padding + final slice.
    for B, blk in ((8, None), (1536, 8)):
        k1, k2, kd = jax.random.split(kd, 3)
        x1 = jax.random.normal(k1, (B, 3), jnp.float32)
        x2 = jax.random.normal(k2, (B, 4), jnp.float32)

        out = model_with_multiple_inputs(x1, x2, w1, b1, w2, b2,
                                         block_rows=blk)
        out = jax.block_until_ready(out)

        ref = jnp.squeeze(x1 @ w1.T + b1, axis=-1)
        assert out.shape == (B,), out.shape
        assert jnp.allclose(out, ref, atol=1e-5, rtol=1e-5), \
            float(jnp.max(jnp.abs(out - ref)))

    print("KERNEL_OK")
</pallas_src>

<mosaic_0001>
module attributes {stable_mosaic.version = 11 : i64} {
  func.func @_linear1_kernel(%arg0: i32, %arg1: memref<3xf32, #tpu.memory_space<smem>>, %arg2: memref<1xf32, #tpu.memory_space<smem>>, %arg3: memref<3x8x128xf32, #tpu.memory_space<vmem>>, %arg4: memref<8x128xf32, #tpu.memory_space<vmem>>) attributes {dimension_semantics = [#tpu.dimension_semantics<parallel>], iteration_bounds = array<i64: 1>, scalar_prefetch = 0 : i64, scratch_operands = 0 : i64, tpu.core_type = #tpu.core_type<tc>, window_params = [{transform_indices = @transform_0, window_bounds = array<i64: 3>}, {transform_indices = @transform_1, window_bounds = array<i64: 1>}, {transform_indices = @transform_2, window_bounds = array<i64: 3, 8, 128>}, {transform_indices = @transform_3, window_bounds = array<i64: 8, 128>}]} {
    %c0 = arith.constant 0 : index
    %c0_0 = arith.constant 0 : index
    %c0_1 = arith.constant 0 : index
    %0 = vector.load %arg3[%c0, %c0_0, %c0_1] : memref<3x8x128xf32, #tpu.memory_space<vmem>>, vector<3x8x128xf32>
    %1 = vector.extract_strided_slice %0 {offsets = [0, 0, 0], sizes = [1, 8, 128], strides = [1, 1, 1]} : vector<3x8x128xf32> to vector<1x8x128xf32>
    %2 = vector.shape_cast %1 : vector<1x8x128xf32> to vector<8x128xf32>
    %c0_2 = arith.constant 0 : index
    %3 = memref.load %arg1[%c0_2] : memref<3xf32, #tpu.memory_space<smem>>
    %4 = vector.broadcast %3 : f32 to vector<8x128xf32>
    %5 = arith.mulf %2, %4 : vector<8x128xf32>
    %6 = vector.extract_strided_slice %0 {offsets = [1, 0, 0], sizes = [1, 8, 128], strides = [1, 1, 1]} : vector<3x8x128xf32> to vector<1x8x128xf32>
    %7 = vector.shape_cast %6 : vector<1x8x128xf32> to vector<8x128xf32>
    %c1 = arith.constant 1 : index
    %8 = memref.load %arg1[%c1] : memref<3xf32, #tpu.memory_space<smem>>
    %9 = vector.broadcast %8 : f32 to vector<8x128xf32>
    %10 = arith.mulf %7, %9 : vector<8x128xf32>
    %11 = arith.addf %5, %10 : vector<8x128xf32>
    %12 = vector.extract_strided_slice %0 {offsets = [2, 0, 0], sizes = [1, 8, 128], strides = [1, 1, 1]} : vector<3x8x128xf32> to vector<1x8x128xf32>
    %13 = vector.shape_cast %12 : vector<1x8x128xf32> to vector<8x128xf32>
    %c2 = arith.constant 2 : index
    %14 = memref.load %arg1[%c2] : memref<3xf32, #tpu.memory_space<smem>>
    %15 = vector.broadcast %14 : f32 to vector<8x128xf32>
    %16 = arith.mulf %13, %15 : vector<8x128xf32>
    %17 = arith.addf %11, %16 : vector<8x128xf32>
    %c0_3 = arith.constant 0 : index
    %18 = memref.load %arg2[%c0_3] : memref<1xf32, #tpu.memory_space<smem>>
    %19 = vector.broadcast %18 : f32 to vector<8x128xf32>
    %20 = arith.addf %17, %19 : vector<8x128xf32>
    %c0_4 = arith.constant 0 : index
    %c0_5 = arith.constant 0 : index
    %21 = vector.load %arg4[%c0_4, %c0_5] : memref<8x128xf32, #tpu.memory_space<vmem>>, vector<8x128xf32>
    tpu.vector_store %arg4[%c0_4, %c0_5], %20 {strides = array<i32>} : memref<8x128xf32, #tpu.memory_space<vmem>>, vector<8x128xf32>,
    return
  }
  func.func @transform_0(%arg0: i32) -> i32 {
    %c0_i32 = arith.constant 0 : i32
    %c0_i32_0 = arith.constant 0 : i32
    return %c0_i32 : i32
  }
  func.func @transform_1(%arg0: i32) -> i32 {
    %c0_i32 = arith.constant 0 : i32
    %c0_i32_0 = arith.constant 0 : i32
    return %c0_i32 : i32
  }
  func.func @transform_2(%arg0: i32) -> (i32, i32, i32) {
    %c0_i32 = arith.constant 0 : i32
    %c0_i32_0 = arith.constant 0 : i32
    %c0_i32_1 = arith.constant 0 : i32
    return %c0_i32, %arg0, %c0_i32_0 : i32, i32, i32
  }
  func.func @transform_3(%arg0: i32) -> (i32, i32) {
    %c0_i32 = arith.constant 0 : i32
    %c0_i32_0 = arith.constant 0 : i32
    return %arg0, %c0_i32 : i32, i32
  }
}

</mosaic_0001>

<llo_original>
// kernel: _linear1_pallas.1
$region0: #{_linear1_pallas.1}
  #allocation0 [shape = 'u32[]', space=smem, size = 0x4, offset = 0x4, fixed_abs, tag = 'smem constant byte address 0x4 - core index']
  #allocation1 [shape = 'u32[144,128]{1,0:T(1,128)}', space=vmem, size = 0x12000, scoped, tag = 'internal scratch']
  #allocation2 [shape = 'f32[1]{0:T(128)S(6)}', space=smem, size = 0x200, scoped, tag = 'scoped memory for _linear1_pallas.1']
  %s0 = inlined_call_operand.vmem [shape: f32[3], index: 0, kind: input, shape index: {}]
  %s1 = inlined_call_operand.<no memory space> [shape: f32[1], index: 1, kind: input, shape index: {}]
  %s2 = inlined_call_operand.vmem [shape: f32[3,8,128], index: 2, kind: input, shape index: {}]
  %s3 = inlined_call_operand.vmem [shape: f32[8,128], index: 3, kind: output, shape index: {}]
  %s4 = sld [smem:[#allocation0]]
  $region26: #{_linear1_pallas.1} parent=0
    _
  %s6 = ssub.s32 1, %s4
  %s7 = scalar_select 0, %s6, %s4
  %8 = sst [smem:[#allocation2]] %s1
  $region1: #{_linear1_pallas.1} parent=0
    #allocation3 [shape = 'u8[512]{0}', space=smem, size = 0x200, scoped, tag = 'input window, operand 0, single buffered']
    #allocation4 [shape = 's32[1]{0}', space=sflag, size = 0x4, scoped, tag = 'scoped memory for _linear1_pallas.1']
    %9 = vsyncpa [#allocation4], 0
    // Predicated region
    $region2: #{_linear1_pallas.1} parent=1 // pred_check
      _
    $region3: #{_linear1_pallas.1} parent=1 // pred_check_branch
      %11 = sbr.rel (0) target = $region5
    $region4: #{_linear1_pallas.1} parent=1 // pred_region
      %s13 = ssub.s32 16, 16
      %14 = vsyncadd [#allocation4], %s13
      %s16 = sshll.u32 %s0, 4
      %s17 = int_to_ptr.vmem [resolvable:$true] %s16
      %19 = dma.vmem_to_smem %s17, 16, [#allocation3], [#allocation4]
    $region5: #{_linear1_pallas.1} parent=1 // pred_fallthru
      _
    // Predicated region
    $region6: #{_linear1_pallas.1} parent=1 // pred_check
      _
    $region7: #{_linear1_pallas.1} parent=1 // pred_check_branch
      %21 = sbr.rel (0) target = $region9
    $region8: #{_linear1_pallas.1} parent=1 // pred_region
      _
    $region9: #{_linear1_pallas.1} parent=1 // pred_fallthru
      _
    // Predicated region
    $region10: #{_linear1_pallas.1} parent=1 // pred_check
      _
    $region11: #{_linear1_pallas.1} parent=1 // pred_check_branch
      %23 = sbr.rel (0) target = $region13
    $region12: #{_linear1_pallas.1} parent=1 // pred_region
      _
    $region13: #{_linear1_pallas.1} parent=1 // pred_fallthru
      _
    // Predicated region
    $region14: #{_linear1_pallas.1} parent=1 // pred_check
      _
    $region15: #{_linear1_pallas.1} parent=1 // pred_check_branch
      %25 = sbr.rel (0) target = $region17
    $region16: #{_linear1_pallas.1} parent=1 // pred_region
      %26 = dma.done [#allocation4], 16
    $region17: #{_linear1_pallas.1} parent=1 // pred_fallthru
      _
    %27 = sfence
    %v28 = vld [vmem:[%s2] sm:$0xff]
    %v29 = vld [vmem:[%s2 + $0x8] sm:$0xff]
    %v30 = vld [vmem:[%s2 + $0x10] sm:$0xff]
    %s31 = sld [smem:[#allocation3]]
    %v32 = vstv %s31
    %v33 = vmul.f32 %v28, %v32
    %s34 = sld [smem:[#allocation3 + $0x1]]
    %v35 = vstv %s34
    %v36 = vmul.f32 %v29, %v35
    %v37 = vadd.f32 %v33, %v36
    %s38 = sld [smem:[#allocation3 + $0x2]]
    %v39 = vstv %s38
    %v40 = vmul.f32 %v30, %v39
    %v41 = vadd.f32 %v37, %v40
    %s42 = sld [smem:[#allocation2]]
    %v43 = vstv %s42
    %v44 = vadd.f32 %v41, %v43
    %45 = vst [vmem:[%s3] sm:$0xff] %v44
    // Predicated region
    $region18: #{_linear1_pallas.1} parent=1 // pred_check
      _
    $region19: #{_linear1_pallas.1} parent=1 // pred_check_branch
      %47 = sbr.rel (0) target = $region21
    $region20: #{_linear1_pallas.1} parent=1 // pred_region
      _
    $region21: #{_linear1_pallas.1} parent=1 // pred_fallthru
      _
    // Predicated region
    $region22: #{_linear1_pallas.1} parent=1 // pred_check
      _
    $region23: #{_linear1_pallas.1} parent=1 // pred_check_branch
      %49 = sbr.rel (0) target = $region25
    $region24: #{_linear1_pallas.1} parent=1 // pred_region
      _
    $region25: #{_linear1_pallas.1} parent=1 // pred_fallthru
      _
    %50 = vsyncpa [#allocation4], 1

</llo_original>
